<compile_context>
chip_gen: v5e
topology: v5e:2x2
jax: 0.10.0
libtpu: 0.0.40
codegen_flags: <defaults>
</compile_context>

<pallas_src>
import jax
import jax.numpy as jnp
from jax import lax
from jax.experimental import pallas as pl
from jax.experimental.pallas import tpu as pltpu


def _complex_score_kernel(q_ref, w_ref, scores_ref):
    # q_ref: (B, 2R), w_ref: (tile_n, 2R); contract over the packed [re|im] axis.
    # scores[b, n] = sum_k q[b, k] * w[n, k]  ==  q_re . ent_re + q_im . ent_im
    scores_ref[...] = lax.dot_general(
        q_ref[...], w_ref[...],
        dimension_numbers=(((1,), (1,)), ((), ())),
        preferred_element_type=jnp.float32,
    ).astype(scores_ref.dtype)


def complex_forward(x, ent_emb, rel_emb, rank, *, tile_n=512, weight_dtype=None):
    """ComplEx.forward: returns (scores (B, N_ent), (f_lhs, f_rel, f_rhs))."""
    B = x.shape[0]
    N_ent, two_r = ent_emb.shape
    R = rank
    assert two_r == 2 * R

    # ---- glue: embedding lookups + complex product + regularizer norms ----
    lhs = ent_emb[x[:, 0]]            # (B, 2R)
    rel = rel_emb[x[:, 1]]            # (B, 2R)
    rhs = ent_emb[x[:, 2]]            # (B, 2R)
    lhs_re, lhs_im = lhs[:, :R], lhs[:, R:]
    rel_re, rel_im = rel[:, :R], rel[:, R:]
    rhs_re, rhs_im = rhs[:, :R], rhs[:, R:]

    # q = [Re(lhs*rel) | Im(lhs*rel)]  -- computed once, lane-dense (B, 2R)
    q = jnp.concatenate(
        [lhs_re * rel_re - lhs_im * rel_im,
         lhs_re * rel_im + lhs_im * rel_re], axis=1)

    factors = (jnp.sqrt(lhs_re ** 2 + lhs_im ** 2),
               jnp.sqrt(rel_re ** 2 + rel_im ** 2),
               jnp.sqrt(rhs_re ** 2 + rhs_im ** 2))

    # ---- tile / pad the entity axis ----
    tile_n = max(128, min(tile_n, pl.cdiv(N_ent, 128) * 128))   # multiple of 128
    n_tiles = pl.cdiv(N_ent, tile_n)
    N_pad = n_tiles * tile_n

    w = ent_emb
    if N_pad != N_ent:
        w = jnp.pad(w, ((0, N_pad - N_ent), (0, 0)))            # zero rows -> score 0

    w_dtype = jnp.dtype(weight_dtype) if weight_dtype is not None else jnp.dtype(w.dtype)
    w = w.astype(w_dtype)
    q_in = q.astype(w_dtype)
    itemsize = w_dtype.itemsize

    cost = pl.CostEstimate(
        flops=2 * B * (2 * R) * N_pad,
        transcendentals=0,
        bytes_accessed=N_pad * 2 * R * itemsize
        + B * 2 * R * itemsize
        + B * N_pad * 4,
    )

    # Double-buffered entity tile + scores tile + resident q; cap so the limit
    # stays safe on v7x (64 MiB physical VMEM) while allowing big tiles on v5e/v6e.
    vmem_need = (2 * tile_n * 2 * R * itemsize
                 + 2 * B * tile_n * 4
                 + 2 * B * 2 * R * itemsize)
    vmem_limit = int(min(max(2 * vmem_need + (4 << 20), 16 << 20), 48 << 20))

    grid_spec = pltpu.PrefetchScalarGridSpec(
        num_scalar_prefetch=0,
        grid=(n_tiles,),
        in_specs=[
            pl.BlockSpec((B, 2 * R), lambda j: (0, 0)),        # q: resident, re-read
            pl.BlockSpec((tile_n, 2 * R), lambda j: (j, 0)),   # streamed entity tile
        ],
        out_specs=pl.BlockSpec((B, tile_n), lambda j: (0, j)),
    )

    scores = pl.pallas_call(
        _complex_score_kernel,
        out_shape=jax.ShapeDtypeStruct((B, N_pad), jnp.float32),
        grid_spec=grid_spec,
        compiler_params=pltpu.CompilerParams(
            dimension_semantics=("parallel",),   # shard entity tiles across TCs (v7x)
            vmem_limit_bytes=vmem_limit,
        ),
        cost_estimate=cost,
    )(q_in, w)

    if N_pad != N_ent:
        scores = scores[:, :N_ent]
    return scores, factors


def complex_forward_ref(x, ent_emb, rel_emb, rank):
    """Pure-JAX reference mirroring the PyTorch forward."""
    R = rank
    lhs = ent_emb[x[:, 0]]
    rel = rel_emb[x[:, 1]]
    rhs = ent_emb[x[:, 2]]
    lhs = (lhs[:, :R], lhs[:, R:])
    rel = (rel[:, :R], rel[:, R:])
    rhs = (rhs[:, :R], rhs[:, R:])
    to_score = (ent_emb[:, :R], ent_emb[:, R:])
    scores = ((lhs[0] * rel[0] - lhs[1] * rel[1]) @ to_score[0].T
              + (lhs[0] * rel[1] + lhs[1] * rel[0]) @ to_score[1].T)
    factors = (jnp.sqrt(lhs[0] ** 2 + lhs[1] ** 2),
               jnp.sqrt(rel[0] ** 2 + rel[1] ** 2),
               jnp.sqrt(rhs[0] ** 2 + rhs[1] ** 2))
    return scores, factors


if __name__ == "__main__":
    # sizes = (n_entities, n_relations, n_entities), rank, init_size as in ComplEx.__init__
    N_ENT, N_REL = 300, 16        # N_ENT deliberately not a tile multiple (exercises padding)
    RANK = 64
    INIT_SIZE = 0.001
    B = 8

    key = jax.random.PRNGKey(0)
    k_ent, k_rel, k_h, k_r, k_t = jax.random.split(key, 5)

    # nn.Embedding default init is N(0, 1); ComplEx scales by init_size.
    ent_emb = jax.random.normal(k_ent, (N_ENT, 2 * RANK), jnp.float32) * INIT_SIZE
    rel_emb = jax.random.normal(k_rel, (N_REL, 2 * RANK), jnp.float32) * INIT_SIZE

    x = jnp.stack([
        jax.random.randint(k_h, (B,), 0, N_ENT),
        jax.random.randint(k_r, (B,), 0, N_REL),
        jax.random.randint(k_t, (B,), 0, N_ENT),
    ], axis=1).astype(jnp.int32)

    # f32 path: must match the reference tightly.
    scores, factors = complex_forward(x, ent_emb, rel_emb, RANK)
    jax.block_until_ready(scores)
    jax.block_until_ready(factors)

    scores_ref, factors_ref = complex_forward_ref(x, ent_emb, rel_emb, RANK)

    assert scores.shape == (B, N_ENT)
    assert all(f.shape == (B, RANK) for f in factors)
    assert jnp.allclose(scores, scores_ref, atol=1e-6, rtol=1e-5)
    for f, f_ref in zip(factors, factors_ref):
        assert jnp.allclose(f, f_ref, atol=1e-6, rtol=1e-5)

    # bf16-streamed entity table (halves HBM traffic); f32 MXU accumulation.
    scores_bf16, _ = complex_forward(x, ent_emb, rel_emb, RANK,
                                     weight_dtype=jnp.bfloat16)
    jax.block_until_ready(scores_bf16)
    rel_err = (jnp.max(jnp.abs(scores_bf16 - scores_ref))
               / (jnp.max(jnp.abs(scores_ref)) + 1e-30))
    assert float(rel_err) < 5e-2

    print("KERNEL_OK")
</pallas_src>

<mosaic_0001>
module attributes {stable_mosaic.version = 11 : i64} {
  func.func @_complex_score_kernel(%arg0: i32, %arg1: memref<8x128xf32, #tpu.memory_space<vmem>>, %arg2: memref<384x128xf32, #tpu.memory_space<vmem>>, %arg3: memref<8x384xf32, #tpu.memory_space<vmem>>) attributes {dimension_semantics = [#tpu.dimension_semantics<parallel>], iteration_bounds = array<i64: 1>, scalar_prefetch = 0 : i64, scratch_operands = 0 : i64, tpu.core_type = #tpu.core_type<tc>, window_params = [{pipeline_mode = #tpu.pipeline_mode<synchronous>, transform_indices = @transform_0, window_bounds = array<i64: 8, 128>}, {transform_indices = @transform_1, window_bounds = array<i64: 384, 128>}, {transform_indices = @transform_2, window_bounds = array<i64: 8, 384>}]} {
    %c0 = arith.constant 0 : index
    %c0_0 = arith.constant 0 : index
    %0 = vector.load %arg1[%c0, %c0_0] : memref<8x128xf32, #tpu.memory_space<vmem>>, vector<8x128xf32>
    %c0_1 = arith.constant 0 : index
    %c0_2 = arith.constant 0 : index
    %1 = vector.load %arg2[%c0_1, %c0_2] : memref<384x128xf32, #tpu.memory_space<vmem>>, vector<384x128xf32>
    %cst = arith.constant dense<0.000000e+00> : vector<8x384xf32>
    %2 = tpu.matmul %0, %1, %cst {dimension_numbers = #tpu.dot_dimension_numbers<[1], [1], [0], [0], [0, 0, 1, 0], [], []>} : vector<8x128xf32>, vector<384x128xf32>, vector<8x384xf32> -> vector<8x384xf32>
    %c0_3 = arith.constant 0 : index
    %c0_4 = arith.constant 0 : index
    %3 = vector.load %arg3[%c0_3, %c0_4] : memref<8x384xf32, #tpu.memory_space<vmem>>, vector<8x384xf32>
    tpu.vector_store %arg3[%c0_3, %c0_4], %2 {strides = array<i32>} : memref<8x384xf32, #tpu.memory_space<vmem>>, vector<8x384xf32>,
    return
  }
  func.func @transform_0(%arg0: i32) -> (i32, i32) {
    %c0_i32 = arith.constant 0 : i32
    %c0_i32_0 = arith.constant 0 : i32
    %c0_i32_1 = arith.constant 0 : i32
    return %c0_i32, %c0_i32_0 : i32, i32
  }
  func.func @transform_1(%arg0: i32) -> (i32, i32) {
    %c0_i32 = arith.constant 0 : i32
    %c0_i32_0 = arith.constant 0 : i32
    return %arg0, %c0_i32 : i32, i32
  }
  func.func @transform_2(%arg0: i32) -> (i32, i32) {
    %c0_i32 = arith.constant 0 : i32
    %c0_i32_0 = arith.constant 0 : i32
    return %c0_i32, %arg0 : i32, i32
  }
}

</mosaic_0001>

<llo_original>
// kernel: tpu_custom_call.1
$region0: #{tpu_custom_call.1}
  #allocation0 [shape = 'u32[]', space=smem, size = 0x4, offset = 0x4, fixed_abs, tag = 'smem constant byte address 0x4 - core index']
  #allocation1 [shape = 'u32[72,128]{1,0:T(1,128)}', space=vmem, size = 0x9000, scoped, tag = 'internal scratch']
  %s0 = inlined_call_operand.hbm [shape: f32[8,128], index: 0, kind: input, shape index: {}]
  %s1 = inlined_call_operand.hbm [shape: f32[384,128], index: 1, kind: input, shape index: {}]
  %s2 = inlined_call_operand.hbm [shape: f32[8,384], index: 2, kind: output, shape index: {}]
  %s3 = sld [smem:[#allocation0]]
  $region26: #{tpu_custom_call.1} parent=0
    _
  %s5 = ssub.s32 1, %s3
  %s6 = scalar_select 0, %s5, %s3
  $region1: #{tpu_custom_call.1} parent=0
    #allocation2 [shape = 'u8[4096]{0}', space=vmem, size = 0x1000, scoped, tag = 'input window, operand 0, single buffered']
    #allocation3 [shape = 's32[1]{0}', space=sflag, size = 0x4, scoped, tag = 'scoped memory for tpu_custom_call.1']
    #allocation4 [shape = 's32[1]{0}', space=sflag, size = 0x4, scoped, tag = 'scoped memory for tpu_custom_call.1']
    #allocation5 [shape = 'u8[196608]{0}', space=vmem, size = 0x30000, scoped, tag = 'input window, operand 1, single buffered']
    #allocation6 [shape = 's32[1]{0}', space=sflag, size = 0x4, scoped, tag = 'scoped memory for tpu_custom_call.1']
    #allocation7 [shape = 'u8[12288]{0}', space=vmem, size = 0x3000, scoped, tag = 'output window, operand 0, single buffered']
    %7 = vsyncpa [#allocation3], 0
    %8 = vsyncpa [#allocation6], 0
    %9 = vsyncpa [#allocation4], 0
    // Predicated region
    $region2: #{tpu_custom_call.1} parent=1 // pred_check
      _
    $region3: #{tpu_custom_call.1} parent=1 // pred_check_branch
      %11 = sbr.rel (0) target = $region5
    $region4: #{tpu_custom_call.1} parent=1 // pred_region
      %13 = vsyncadd [#allocation3], 0
      %s15 = sshll.u32 %s0, 4
      %s16 = int_to_ptr.hbm [resolvable:$true] %s15
      %s17 = sshll.u32 [#allocation2], 4
      %s18 = int_to_ptr.vmem [resolvable:$true] %s17
      %20 = dma.hbm_to_vmem [thread:$0]  %s16, 128, %s18, [#allocation3]
    $region5: #{tpu_custom_call.1} parent=1 // pred_fallthru
      _
    // Predicated region
    $region6: #{tpu_custom_call.1} parent=1 // pred_check
      _
    $region7: #{tpu_custom_call.1} parent=1 // pred_check_branch
      %22 = sbr.rel (0) target = $region9
    $region8: #{tpu_custom_call.1} parent=1 // pred_region
      %24 = vsyncadd [#allocation6], 0
      %s25 = sshll.u32 %s1, 4
      %s26 = int_to_ptr.hbm [resolvable:$true] %s25
      %s27 = sshll.u32 [#allocation5], 4
      %s28 = int_to_ptr.vmem [resolvable:$true] %s27
      %33 = dma.hbm_to_vmem [thread:$0]  %s26, 6144, %s28, [#allocation6], 128, 128, 8
    $region9: #{tpu_custom_call.1} parent=1 // pred_fallthru
      _
    // Predicated region
    $region10: #{tpu_custom_call.1} parent=1 // pred_check
      _
    $region11: #{tpu_custom_call.1} parent=1 // pred_check_branch
      %35 = sbr.rel (0) target = $region13
    $region12: #{tpu_custom_call.1} parent=1 // pred_region
      %37 = dma.done [#allocation3], 128
    $region13: #{tpu_custom_call.1} parent=1 // pred_fallthru
      _
    // Predicated region
    $region14: #{tpu_custom_call.1} parent=1 // pred_check
      _
    $region15: #{tpu_custom_call.1} parent=1 // pred_check_branch
      %39 = sbr.rel (0) target = $region17
    $region16: #{tpu_custom_call.1} parent=1 // pred_region
      %41 = dma.done [#allocation6], 6144
    $region17: #{tpu_custom_call.1} parent=1 // pred_fallthru
      _
    %v42 = vld [vmem:[#allocation2] sm:$0xff]
    %v43 = vld [vmem:[#allocation5] sm:$0xff]
    %v44 = vld [vmem:[#allocation5 + $0x8] sm:$0xff]
    %v45 = vld [vmem:[#allocation5 + $0x10] sm:$0xff]
    %v46 = vld [vmem:[#allocation5 + $0x18] sm:$0xff]
    %v47 = vld [vmem:[#allocation5 + $0x20] sm:$0xff]
    %v48 = vld [vmem:[#allocation5 + $0x28] sm:$0xff]
    %v49 = vld [vmem:[#allocation5 + $0x30] sm:$0xff]
    %v50 = vld [vmem:[#allocation5 + $0x38] sm:$0xff]
    %v51 = vld [vmem:[#allocation5 + $0x40] sm:$0xff]
    %v52 = vld [vmem:[#allocation5 + $0x48] sm:$0xff]
    %v53 = vld [vmem:[#allocation5 + $0x50] sm:$0xff]
    %v54 = vld [vmem:[#allocation5 + $0x58] sm:$0xff]
    %v55 = vld [vmem:[#allocation5 + $0x60] sm:$0xff]
    %v56 = vld [vmem:[#allocation5 + $0x68] sm:$0xff]
    %v57 = vld [vmem:[#allocation5 + $0x70] sm:$0xff]
    %v58 = vld [vmem:[#allocation5 + $0x78] sm:$0xff]
    %v59 = vld [vmem:[#allocation5 + $0x80] sm:$0xff]
    %v60 = vld [vmem:[#allocation5 + $0x88] sm:$0xff]
    %v61 = vld [vmem:[#allocation5 + $0x90] sm:$0xff]
    %v62 = vld [vmem:[#allocation5 + $0x98] sm:$0xff]
    %v63 = vld [vmem:[#allocation5 + $0xa0] sm:$0xff]
    %v64 = vld [vmem:[#allocation5 + $0xa8] sm:$0xff]
    %v65 = vld [vmem:[#allocation5 + $0xb0] sm:$0xff]
    %v66 = vld [vmem:[#allocation5 + $0xb8] sm:$0xff]
    %v67 = vld [vmem:[#allocation5 + $0xc0] sm:$0xff]
    %v68 = vld [vmem:[#allocation5 + $0xc8] sm:$0xff]
    %v69 = vld [vmem:[#allocation5 + $0xd0] sm:$0xff]
    %v70 = vld [vmem:[#allocation5 + $0xd8] sm:$0xff]
    %v71 = vld [vmem:[#allocation5 + $0xe0] sm:$0xff]
    %v72 = vld [vmem:[#allocation5 + $0xe8] sm:$0xff]
    %v73 = vld [vmem:[#allocation5 + $0xf0] sm:$0xff]
    %v74 = vld [vmem:[#allocation5 + $0xf8] sm:$0xff]
    %v75 = vld [vmem:[#allocation5 + $0x100] sm:$0xff]
    %v76 = vld [vmem:[#allocation5 + $0x108] sm:$0xff]
    %v77 = vld [vmem:[#allocation5 + $0x110] sm:$0xff]
    %v78 = vld [vmem:[#allocation5 + $0x118] sm:$0xff]
    %v79 = vld [vmem:[#allocation5 + $0x120] sm:$0xff]
    %v80 = vld [vmem:[#allocation5 + $0x128] sm:$0xff]
    %v81 = vld [vmem:[#allocation5 + $0x130] sm:$0xff]
    %v82 = vld [vmem:[#allocation5 + $0x138] sm:$0xff]
    %v83 = vld [vmem:[#allocation5 + $0x140] sm:$0xff]
    %v84 = vld [vmem:[#allocation5 + $0x148] sm:$0xff]
    %v85 = vld [vmem:[#allocation5 + $0x150] sm:$0xff]
    %v86 = vld [vmem:[#allocation5 + $0x158] sm:$0xff]
    %v87 = vld [vmem:[#allocation5 + $0x160] sm:$0xff]
    %v88 = vld [vmem:[#allocation5 + $0x168] sm:$0xff]
    %v89 = vld [vmem:[#allocation5 + $0x170] sm:$0xff]
    %v90 = vld [vmem:[#allocation5 + $0x178] sm:$0xff]
    %91 = vmatpush.xpose.msra.mxu0 %v58
    %92 = vmatpush.xpose.msra.mxu0 %v57
    %93 = vmatpush.xpose.msra.mxu0 %v56
    %94 = vmatpush.xpose.msra.mxu0 %v55
    %95 = vmatpush.xpose.msra.mxu0 %v54
    %96 = vmatpush.xpose.msra.mxu0 %v53
    %97 = vmatpush.xpose.msra.mxu0 %v52
    %98 = vmatpush.xpose.msra.mxu0 %v51
    %99 = vmatpush.xpose.msra.mxu0 %v50
    %100 = vmatpush.xpose.msra.mxu0 %v49
    %101 = vmatpush.xpose.msra.mxu0 %v48
    %102 = vmatpush.xpose.msra.mxu0 %v47
    %103 = vmatpush.xpose.msra.mxu0 %v46
    %104 = vmatpush.xpose.msra.mxu0 %v45
    %105 = vmatpush.xpose.msra.mxu0 %v44
    %106 = vmatpush.xpose.msra.mxu0 %v43
    %107 = vmatmul.f32.gmra.mxu0 %v42
    %v108 = vpop.f32.mrf.mxu0
    %v109 = vadd.f32 0.0, %v108
    %110 = vdwg.mxu0
    %111 = vmatpush.xpose.msra.mxu0 %v74
    %112 = vmatpush.xpose.msra.mxu0 %v73
    %113 = vmatpush.xpose.msra.mxu0 %v72
    %114 = vmatpush.xpose.msra.mxu0 %v71
    %115 = vmatpush.xpose.msra.mxu0 %v70
    %116 = vmatpush.xpose.msra.mxu0 %v69
    %117 = vmatpush.xpose.msra.mxu0 %v68
    %118 = vmatpush.xpose.msra.mxu0 %v67
    %119 = vmatpush.xpose.msra.mxu0 %v66
    %120 = vmatpush.xpose.msra.mxu0 %v65
    %121 = vmatpush.xpose.msra.mxu0 %v64
    %122 = vmatpush.xpose.msra.mxu0 %v63
    %123 = vmatpush.xpose.msra.mxu0 %v62
    %124 = vmatpush.xpose.msra.mxu0 %v61
    %125 = vmatpush.xpose.msra.mxu0 %v60
    %126 = vmatpush.xpose.msra.mxu0 %v59
    %127 = vmatmul.f32.gmra.mxu0 %v42
    %v128 = vpop.f32.mrf.mxu0
    %v129 = vadd.f32 0.0, %v128
    %130 = vdwg.mxu0
    %131 = vmatpush.xpose.msra.mxu0 %v90
    %132 = vmatpush.xpose.msra.mxu0 %v89
    %133 = vmatpush.xpose.msra.mxu0 %v88
    %134 = vmatpush.xpose.msra.mxu0 %v87
    %135 = vmatpush.xpose.msra.mxu0 %v86
    %136 = vmatpush.xpose.msra.mxu0 %v85
    %137 = vmatpush.xpose.msra.mxu0 %v84
    %138 = vmatpush.xpose.msra.mxu0 %v83
    %139 = vmatpush.xpose.msra.mxu0 %v82
    %140 = vmatpush.xpose.msra.mxu0 %v81
    %141 = vmatpush.xpose.msra.mxu0 %v80
    %142 = vmatpush.xpose.msra.mxu0 %v79
    %143 = vmatpush.xpose.msra.mxu0 %v78
    %144 = vmatpush.xpose.msra.mxu0 %v77
    %145 = vmatpush.xpose.msra.mxu0 %v76
    %146 = vmatpush.xpose.msra.mxu0 %v75
    %147 = vmatmul.f32.gmra.mxu0 %v42
    %v148 = vpop.f32.mrf.mxu0
    %v149 = vadd.f32 0.0, %v148
    %150 = vdwg.mxu0
    %151 = vst [vmem:[#allocation7] sm:$0xff] %v109
    %152 = vst [vmem:[#allocation7 + $0x8] sm:$0xff] %v129
    %153 = vst [vmem:[#allocation7 + $0x10] sm:$0xff] %v149
    // Predicated region
    $region18: #{tpu_custom_call.1} parent=1 // pred_check
      _
    $region19: #{tpu_custom_call.1} parent=1 // pred_check_branch
      %155 = sbr.rel (0) target = $region21
    $region20: #{tpu_custom_call.1} parent=1 // pred_region
      %157 = vsyncadd [#allocation4], 0
      %s159 = sshll.u32 [#allocation7], 4
      %s160 = int_to_ptr.vmem [resolvable:$true] %s159
      %s161 = sshll.u32 %s2, 4
      %s162 = int_to_ptr.hbm [resolvable:$true] %s161
      %164 = dma.vmem_to_hbm [thread:$0]  %s160, 384, %s162, [#allocation4]
    $region21: #{tpu_custom_call.1} parent=1 // pred_fallthru
      _
    // Predicated region
    $region22: #{tpu_custom_call.1} parent=1 // pred_check
      _
    $region23: #{tpu_custom_call.1} parent=1 // pred_check_branch
      %166 = sbr.rel (0) target = $region25
    $region24: #{tpu_custom_call.1} parent=1 // pred_region
      %168 = dma.done [#allocation4], 384
    $region25: #{tpu_custom_call.1} parent=1 // pred_fallthru
      _
    %169 = vsyncpa [#allocation3], 1
    %170 = vsyncpa [#allocation6], 1
    %171 = vsyncpa [#allocation4], 1

</llo_original>
